<compile_context>
chip_gen: v7x
topology: tpu7x:2x2x1
jax: 0.10.0
libtpu: 0.0.40
codegen_flags: <defaults>
</compile_context>

<pallas_src>
import functools

import jax
import jax.numpy as jnp
from jax import lax
from jax.experimental import pallas as pl
from jax.experimental.pallas import tpu as pltpu


LANE = 128          # lane width (last-dim alignment)
ROW_ALIGN = 16      # row-tile alignment (bf16 sublane packing = 16, also fine for f32)
TM_MAX = 512        # row-tile sweet spot from measured tile sweeps
EPS = 1e-5          # PyTorch BatchNorm2d default eps
NEG_SLOPE = 0.2     # LeakyReLU slope

_CPARAMS = pltpu.CompilerParams(
    dimension_semantics=("parallel",),      # shard M tiles across TCs on v7x
    vmem_limit_bytes=32 * 1024 * 1024,      # explicit & safe on v5e / v6e / v7x
)


def _round_up(x, m):
    return (x + m - 1) // m * m


# ----------------------------------------------------------------------------
# Pallas kernels
# ----------------------------------------------------------------------------
def _conv_act_kernel(p_ref, w_ref, o_ref, *, neg_slope, use_act):
    """One M-tile of conv-as-matmul (bf16 MXU operands, f32 acc) + optional LeakyReLU."""
    y = jnp.dot(p_ref[...], w_ref[...], preferred_element_type=jnp.float32)
    if use_act:
        y = jnp.maximum(y, neg_slope * y)
    o_ref[...] = y.astype(o_ref.dtype)


def _conv_bn_act_kernel(p_ref, w_ref, g_ref, b_ref, o_ref, *, m_true, eps, neg_slope):
    """Fused conv-as-matmul + BatchNorm (batch stats) + LeakyReLU (single-tile case).

    Valid only when the one tile holds all `m_true` real rows.  Zero-padded rows and
    zero-padded K columns contribute exactly 0 to the matmul, so the column sums are
    exact; the centered second moment masks out padded rows.  Padded output channels
    have gamma == 0, hence scale == 0 and the padded lanes stay exactly 0.
    """
    y = jnp.dot(p_ref[...], w_ref[...], preferred_element_type=jnp.float32)   # (TM, Cp)
    inv_m = 1.0 / m_true
    mean = jnp.sum(y, axis=0, keepdims=True) * inv_m                          # (1, Cp)
    row = lax.broadcasted_iota(jnp.int32, y.shape, 0)
    diff = jnp.where(row < m_true, y - mean, 0.0)
    var = jnp.sum(diff * diff, axis=0, keepdims=True) * inv_m                 # biased var
    scale = g_ref[...] * lax.rsqrt(var + eps)                                 # (1, Cp)
    shift = b_ref[...] - mean * scale
    z = y * scale + shift
    o_ref[...] = jnp.maximum(z, neg_slope * z).astype(o_ref.dtype)


def _conv_stats_kernel(p_ref, w_ref, y_ref, s_ref):
    """Multi-tile fallback pass 1: conv matmul (bf16 store) + per-tile col sum / sumsq.

    Statistics are computed from the f32 accumulator before the bf16 store, so they
    are exact; zero-padded rows contribute nothing and the wrapper divides by the true
    row count.
    """
    y = jnp.dot(p_ref[...], w_ref[...], preferred_element_type=jnp.float32)
    y_ref[...] = y.astype(y_ref.dtype)

    cp = y.shape[1]
    col_sum = jnp.sum(y, axis=0, keepdims=True)        # (1, Cp)
    col_sq = jnp.sum(y * y, axis=0, keepdims=True)     # (1, Cp)
    row = lax.broadcasted_iota(jnp.int32, (8, cp), 0)
    stat = jnp.where(row == 0, jnp.broadcast_to(col_sum, (8, cp)), 0.0)
    stat = jnp.where(row == 1, jnp.broadcast_to(col_sq, (8, cp)), stat)
    s_ref[...] = stat


def _bn_act_kernel(y_ref, sc_ref, sh_ref, o_ref, *, neg_slope):
    """Multi-tile fallback pass 2: y*scale + shift + LeakyReLU (bf16 in / bf16 out)."""
    y = y_ref[...].astype(jnp.float32) * sc_ref[...] + sh_ref[...]
    o_ref[...] = jnp.maximum(y, neg_slope * y).astype(o_ref.dtype)


# ----------------------------------------------------------------------------
# Glue: im2col patch extraction + padding (layout plumbing only)
# ----------------------------------------------------------------------------
def _im2col(x_nhwc, kh, kw, stride, pad):
    if pad:
        x_nhwc = jnp.pad(x_nhwc, ((0, 0), (pad, pad), (pad, pad), (0, 0)))
    B, H, W, C = x_nhwc.shape
    Hout = (H - kh) // stride + 1
    Wout = (W - kw) // stride + 1
    cols = []
    for i in range(kh):
        for j in range(kw):
            cols.append(
                x_nhwc[:, i:i + stride * (Hout - 1) + 1:stride,
                       j:j + stride * (Wout - 1) + 1:stride, :]
            )
    patches = jnp.concatenate(cols, axis=-1)   # (B, Hout, Wout, KH*KW*C), (kh, kw, c) order
    return patches, Hout, Wout


def _prep_matmul(x_nhwc, w_oihw, stride, pad):
    """im2col + bf16 cast + balanced row tiling + lane padding of K and Cout."""
    B, _, _, Cin = x_nhwc.shape
    Cout, _, KH, KW = w_oihw.shape

    patches, Hout, Wout = _im2col(x_nhwc, KH, KW, stride, pad)
    M = B * Hout * Wout
    K = KH * KW * Cin

    # Balanced tiles: padding per tile < ROW_ALIGN rows (never ~2x like round-to-TM_MAX).
    n_tiles = -(-M // TM_MAX)
    TM = _round_up(-(-M // n_tiles), ROW_ALIGN)
    Mp = n_tiles * TM
    Kp = _round_up(K, LANE)
    Cp = _round_up(Cout, LANE)

    p = patches.reshape(M, K).astype(jnp.bfloat16)
    p = jnp.pad(p, ((0, Mp - M), (0, Kp - K)))

    # (Cout, Cin, KH, KW) -> (KH, KW, Cin, Cout) -> (K, Cout), matching patch ordering,
    # then zero-pad K and Cout up to lane-dense multiples of 128.
    wmat = jnp.transpose(w_oihw, (2, 3, 1, 0)).reshape(K, Cout).astype(jnp.bfloat16)
    wmat = jnp.pad(wmat, ((0, Kp - K), (0, Cp - Cout)))

    return p, wmat, dict(M=M, Mp=Mp, K=K, Kp=Kp, Cout=Cout, Cp=Cp, TM=TM,
                         B=B, Hout=Hout, Wout=Wout)


# ----------------------------------------------------------------------------
# Conv layers via pallas_call
# ----------------------------------------------------------------------------
def conv_plain(x_nhwc, w_oihw, stride, pad, *, act, out_dtype=jnp.bfloat16):
    """Conv (no bias) + optional LeakyReLU(0.2)."""
    p, wmat, L = _prep_matmul(x_nhwc, w_oihw, stride, pad)
    TM, Kp, Cp, Mp = L["TM"], L["Kp"], L["Cp"], L["Mp"]
    grid = (Mp // TM,)

    y = pl.pallas_call(
        functools.partial(_conv_act_kernel, neg_slope=NEG_SLOPE, use_act=act),
        out_shape=jax.ShapeDtypeStruct((Mp, Cp), out_dtype),
        grid=grid,
        in_specs=[
            pl.BlockSpec((TM, Kp), lambda i: (i, 0)),    # patch tile (pipelined)
            pl.BlockSpec((Kp, Cp), lambda i: (0, 0)),    # weights resident
        ],
        out_specs=pl.BlockSpec((TM, Cp), lambda i: (i, 0)),
        compiler_params=_CPARAMS,
    )(p, wmat)

    y = y[:L["M"], :L["Cout"]]
    return y.reshape(L["B"], L["Hout"], L["Wout"], L["Cout"])


def conv_bn_lrelu(x_nhwc, w_oihw, gamma, beta, stride, pad):
    """Conv (no bias) + BatchNorm2d (training-mode batch stats) + LeakyReLU(0.2)."""
    p, wmat, L = _prep_matmul(x_nhwc, w_oihw, stride, pad)
    TM, Kp, Cp, Mp, M, Cout = L["TM"], L["Kp"], L["Cp"], L["Mp"], L["M"], L["Cout"]
    n_tiles = Mp // TM

    # gamma padded with 0 (not 1) so padded channel lanes get scale == 0 exactly.
    g = jnp.pad(gamma.astype(jnp.float32), (0, Cp - Cout)).reshape(1, Cp)
    b = jnp.pad(beta.astype(jnp.float32), (0, Cp - Cout)).reshape(1, Cp)

    if n_tiles == 1:
        # Single tile holds the whole batch: fully fused conv + BN + act, one kernel.
        out = pl.pallas_call(
            functools.partial(_conv_bn_act_kernel, m_true=M, eps=EPS,
                              neg_slope=NEG_SLOPE),
            out_shape=jax.ShapeDtypeStruct((Mp, Cp), jnp.bfloat16),
            grid=(1,),
            in_specs=[
                pl.BlockSpec((TM, Kp), lambda i: (i, 0)),
                pl.BlockSpec((Kp, Cp), lambda i: (0, 0)),
                pl.BlockSpec((1, Cp), lambda i: (0, 0)),
                pl.BlockSpec((1, Cp), lambda i: (0, 0)),
            ],
            out_specs=pl.BlockSpec((TM, Cp), lambda i: (i, 0)),
            compiler_params=_CPARAMS,
        )(p, wmat, g, b)
    else:
        # Fallback for large M: pass 1 (matmul + per-tile stats), tiny combine, pass 2.
        y, stats = pl.pallas_call(
            _conv_stats_kernel,
            out_shape=(
                jax.ShapeDtypeStruct((Mp, Cp), jnp.bfloat16),
                jax.ShapeDtypeStruct((n_tiles * 8, Cp), jnp.float32),
            ),
            grid=(n_tiles,),
            in_specs=[
                pl.BlockSpec((TM, Kp), lambda i: (i, 0)),
                pl.BlockSpec((Kp, Cp), lambda i: (0, 0)),
            ],
            out_specs=(
                pl.BlockSpec((TM, Cp), lambda i: (i, 0)),
                pl.BlockSpec((8, Cp), lambda i: (i, 0)),
            ),
            compiler_params=_CPARAMS,
        )(p, wmat)

        st = stats.reshape(n_tiles, 8, Cp)
        col_sum = jnp.sum(st[:, 0, :], axis=0)
        col_sq = jnp.sum(st[:, 1, :], axis=0)
        mean = col_sum / M
        var = jnp.maximum(col_sq / M - mean * mean, 0.0)   # biased variance (BN semantics)
        scale_v = g.reshape(Cp) * lax.rsqrt(var + EPS)
        shift_v = b.reshape(Cp) - mean * scale_v
        scale = scale_v.reshape(1, Cp)
        shift = shift_v.reshape(1, Cp)

        out = pl.pallas_call(
            functools.partial(_bn_act_kernel, neg_slope=NEG_SLOPE),
            out_shape=jax.ShapeDtypeStruct((Mp, Cp), jnp.bfloat16),
            grid=(n_tiles,),
            in_specs=[
                pl.BlockSpec((TM, Cp), lambda i: (i, 0)),
                pl.BlockSpec((1, Cp), lambda i: (0, 0)),
                pl.BlockSpec((1, Cp), lambda i: (0, 0)),
            ],
            out_specs=pl.BlockSpec((TM, Cp), lambda i: (i, 0)),
            compiler_params=_CPARAMS,
        )(y, scale, shift)

    out = out[:M, :Cout]
    return out.reshape(L["B"], L["Hout"], L["Wout"], Cout)


# ----------------------------------------------------------------------------
# Encoder: parameter construction + forward (mirrors the PyTorch module)
# ----------------------------------------------------------------------------
def init_encoder(key, isize, nz, nc, ndf, n_extra_layers=0, add_final_conv=True):
    configs, params = [], []

    def nxt():
        nonlocal key
        key, sub = jax.random.split(key)
        return sub

    def conv_w(shape):
        # deterministic DCGAN-style init N(0, 0.02)
        return 0.02 * jax.random.normal(nxt(), shape, dtype=jnp.float32)

    # initial conv (nc -> ndf, 4x4, stride 2, pad 1, no bias) + LeakyReLU(0.2)
    configs.append(("conv_lrelu", 2, 1))
    params.append(dict(w=conv_w((ndf, nc, 4, 4))))
    csize, cndf = isize // 2, ndf
    last_layer_conv = 3 if isize == 28 else 4

    # extra layers: conv 3x3 s1 p1 + BN + LeakyReLU
    for _ in range(n_extra_layers):
        configs.append(("conv_bn_lrelu", 1, 1))
        params.append(dict(w=conv_w((cndf, cndf, 3, 3)),
                           gamma=jnp.ones((cndf,), jnp.float32),
                           beta=jnp.zeros((cndf,), jnp.float32)))

    # pyramid: conv 4x4 s2 p1 (c -> 2c) + BN + LeakyReLU, while spatial > 4
    while csize > 4:
        in_f, out_f = cndf, cndf * 2
        configs.append(("conv_bn_lrelu", 2, 1))
        params.append(dict(w=conv_w((out_f, in_f, 4, 4)),
                           gamma=jnp.ones((out_f,), jnp.float32),
                           beta=jnp.zeros((out_f,), jnp.float32)))
        cndf *= 2
        csize //= 2

    # final conv (cndf -> nz, k=last_layer_conv, stride 1, pad 0, no bias, no activation)
    if add_final_conv:
        configs.append(("conv", 1, 0))
        params.append(dict(w=conv_w((nz, cndf, last_layer_conv, last_layer_conv))))

    return tuple(configs), params


def make_encoder_forward(configs):
    """Returns a jitted forward over (params, x_nchw); configs are closed statically."""

    @jax.jit
    def fwd(params, x_nchw):
        x = jnp.transpose(x_nchw, (0, 2, 3, 1))  # NCHW -> NHWC for the kernels
        for (kind, stride, pad), prm in zip(configs, params):
            if kind == "conv_lrelu":
                x = conv_plain(x, prm["w"], stride, pad, act=True,
                               out_dtype=jnp.bfloat16)
            elif kind == "conv_bn_lrelu":
                x = conv_bn_lrelu(x, prm["w"], prm["gamma"], prm["beta"], stride, pad)
            else:  # final conv, no BN / no activation, f32 output
                x = conv_plain(x, prm["w"], stride, pad, act=False,
                               out_dtype=jnp.float32)
        return jnp.transpose(x, (0, 3, 1, 2))    # NHWC -> NCHW (B, nz, 1, 1)

    return fwd


# ----------------------------------------------------------------------------
if __name__ == "__main__":
    # Encoder(isize=16, nz=16, nc=4, ndf=8, ngpu=1, n_extra_layers=0)
    isize, nz, nc, ndf = 16, 16, 4, 8
    B = 2

    key = jax.random.PRNGKey(0)
    pkey, xkey = jax.random.split(key)

    configs, params = init_encoder(pkey, isize, nz, nc, ndf,
                                   n_extra_layers=0, add_final_conv=True)
    forward = make_encoder_forward(configs)

    x = jax.random.normal(xkey, (B, nc, isize, isize), dtype=jnp.float32)  # NCHW input

    out = forward(params, x)
    out = jax.block_until_ready(out)

    assert out.shape == (B, nz, 1, 1), out.shape
    assert bool(jnp.all(jnp.isfinite(out)))
    print("KERNEL_OK")
</pallas_src>

<mosaic_0001>
module attributes {stable_mosaic.version = 11 : i64} {
  func.func @_conv_act_kernel(%arg0: i32, %arg1: memref<128x128xbf16, #tpu.memory_space<vmem>>, %arg2: memref<128x128xbf16, #tpu.memory_space<vmem>>, %arg3: memref<128x128xbf16, #tpu.memory_space<vmem>>) attributes {dimension_semantics = [#tpu.dimension_semantics<parallel>], iteration_bounds = array<i64: 1>, scalar_prefetch = 0 : i64, scratch_operands = 0 : i64, tpu.core_type = #tpu.core_type<tc>, window_params = [{transform_indices = @transform_0, window_bounds = array<i64: 128, 128>}, {pipeline_mode = #tpu.pipeline_mode<synchronous>, transform_indices = @transform_1, window_bounds = array<i64: 128, 128>}, {transform_indices = @transform_2, window_bounds = array<i64: 128, 128>}]} {
    %c0 = arith.constant 0 : index
    %c0_0 = arith.constant 0 : index
    %0 = vector.load %arg1[%c0, %c0_0] : memref<128x128xbf16, #tpu.memory_space<vmem>>, vector<128x128xbf16>
    %c0_1 = arith.constant 0 : index
    %c0_2 = arith.constant 0 : index
    %1 = vector.load %arg2[%c0_1, %c0_2] : memref<128x128xbf16, #tpu.memory_space<vmem>>, vector<128x128xbf16>
    %cst = arith.constant dense<0.000000e+00> : vector<128x128xf32>
    %2 = tpu.matmul %0, %1, %cst {dimension_numbers = #tpu.dot_dimension_numbers<[1], [0], [0], [1], [0, 0, 1, 1], [], []>} : vector<128x128xbf16>, vector<128x128xbf16>, vector<128x128xf32> -> vector<128x128xf32>
    %cst_3 = arith.constant 2.000000e-01 : f32
    %3 = vector.broadcast %cst_3 : f32 to vector<128x128xf32>
    %4 = arith.mulf %3, %2 : vector<128x128xf32>
    %5 = arith.maximumf %2, %4 : vector<128x128xf32>
    %6 = arith.truncf %5 : vector<128x128xf32> to vector<128x128xbf16>
    %c0_4 = arith.constant 0 : index
    %c0_5 = arith.constant 0 : index
    %7 = vector.load %arg3[%c0_4, %c0_5] : memref<128x128xbf16, #tpu.memory_space<vmem>>, vector<128x128xbf16>
    tpu.vector_store %arg3[%c0_4, %c0_5], %6 {strides = array<i32>} : memref<128x128xbf16, #tpu.memory_space<vmem>>, vector<128x128xbf16>,
    return
  }
  func.func @transform_0(%arg0: i32) -> (i32, i32) {
    %c0_i32 = arith.constant 0 : i32
    %c0_i32_0 = arith.constant 0 : i32
    return %arg0, %c0_i32 : i32, i32
  }
  func.func @transform_1(%arg0: i32) -> (i32, i32) {
    %c0_i32 = arith.constant 0 : i32
    %c0_i32_0 = arith.constant 0 : i32
    %c0_i32_1 = arith.constant 0 : i32
    return %c0_i32, %c0_i32_0 : i32, i32
  }
  func.func @transform_2(%arg0: i32) -> (i32, i32) {
    %c0_i32 = arith.constant 0 : i32
    %c0_i32_0 = arith.constant 0 : i32
    return %arg0, %c0_i32 : i32, i32
  }
}

module attributes {stable_mosaic.version = 11 : i64} {
  func.func @_conv_bn_act_kernel(%arg0: i32, %arg1: memref<32x128xbf16, #tpu.memory_space<vmem>>, %arg2: memref<128x128xbf16, #tpu.memory_space<vmem>>, %arg3: memref<1x128xf32, #tpu.memory_space<vmem>>, %arg4: memref<1x128xf32, #tpu.memory_space<vmem>>, %arg5: memref<32x128xbf16, #tpu.memory_space<vmem>>) attributes {dimension_semantics = [#tpu.dimension_semantics<parallel>], iteration_bounds = array<i64: 1>, scalar_prefetch = 0 : i64, scratch_operands = 0 : i64, tpu.core_type = #tpu.core_type<tc>, window_params = [{transform_indices = @transform_0, window_bounds = array<i64: 32, 128>}, {pipeline_mode = #tpu.pipeline_mode<synchronous>, transform_indices = @transform_1, window_bounds = array<i64: 128, 128>}, {pipeline_mode = #tpu.pipeline_mode<synchronous>, transform_indices = @transform_2, window_bounds = array<i64: 1, 128>}, {pipeline_mode = #tpu.pipeline_mode<synchronous>, transform_indices = @transform_3, window_bounds = array<i64: 1, 128>}, {transform_indices = @transform_4, window_bounds = array<i64: 32, 128>}]} {
    %c0 = arith.constant 0 : index
    %c0_0 = arith.constant 0 : index
    %0 = vector.load %arg1[%c0, %c0_0] : memref<32x128xbf16, #tpu.memory_space<vmem>>, vector<32x128xbf16>
    %c0_1 = arith.constant 0 : index
    %c0_2 = arith.constant 0 : index
    %1 = vector.load %arg2[%c0_1, %c0_2] : memref<128x128xbf16, #tpu.memory_space<vmem>>, vector<128x128xbf16>
    %cst = arith.constant dense<0.000000e+00> : vector<32x128xf32>
    %2 = tpu.matmul %0, %1, %cst {dimension_numbers = #tpu.dot_dimension_numbers<[1], [0], [0], [1], [0, 0, 1, 1], [], []>} : vector<32x128xbf16>, vector<128x128xbf16>, vector<32x128xf32> -> vector<32x128xf32>
    %cst_3 = arith.constant dense<0.000000e+00> : vector<128xf32>
    %3 = vector.multi_reduction <add>, %2, %cst_3 [0] : vector<32x128xf32> to vector<128xf32>
    %4 = vector.shape_cast %3 : vector<128xf32> to vector<1x128xf32>
    %cst_4 = arith.constant 3.125000e-02 : f32
    %5 = vector.broadcast %cst_4 : f32 to vector<1x128xf32>
    %6 = arith.mulf %4, %5 : vector<1x128xf32>
    %7 = tpu.iota {dimensions = array<i32: 0>} : vector<32x128xi32>
    %c32_i32 = arith.constant 32 : i32
    %8 = vector.broadcast %c32_i32 : i32 to vector<32x128xi32>
    %9 = arith.cmpi slt, %7, %8 : vector<32x128xi32>
    %10 = vector.broadcast %6 : vector<1x128xf32> to vector<32x128xf32>
    %11 = arith.subf %2, %10 : vector<32x128xf32>
    %cst_5 = arith.constant 0.000000e+00 : f32
    %12 = vector.broadcast %cst_5 : f32 to vector<32x128xf32>
    %13 = arith.select %9, %11, %12 : vector<32x128xi1>, vector<32x128xf32>
    %14 = arith.mulf %13, %13 : vector<32x128xf32>
    %cst_6 = arith.constant dense<0.000000e+00> : vector<128xf32>
    %15 = vector.multi_reduction <add>, %14, %cst_6 [0] : vector<32x128xf32> to vector<128xf32>
    %16 = vector.shape_cast %15 : vector<128xf32> to vector<1x128xf32>
    %cst_7 = arith.constant 3.125000e-02 : f32
    %17 = vector.broadcast %cst_7 : f32 to vector<1x128xf32>
    %18 = arith.mulf %16, %17 : vector<1x128xf32>
    %c0_8 = arith.constant 0 : index
    %c0_9 = arith.constant 0 : index
    %19 = vector.load %arg3[%c0_8, %c0_9] : memref<1x128xf32, #tpu.memory_space<vmem>>, vector<1x128xf32>
    %cst_10 = arith.constant 9.99999974E-6 : f32
    %20 = vector.broadcast %cst_10 : f32 to vector<1x128xf32>
    %21 = arith.addf %18, %20 : vector<1x128xf32>
    %22 = math.rsqrt %21 : vector<1x128xf32>
    %23 = arith.mulf %19, %22 : vector<1x128xf32>
    %c0_11 = arith.constant 0 : index
    %c0_12 = arith.constant 0 : index
    %24 = vector.load %arg4[%c0_11, %c0_12] : memref<1x128xf32, #tpu.memory_space<vmem>>, vector<1x128xf32>
    %25 = arith.mulf %6, %23 : vector<1x128xf32>
    %26 = arith.subf %24, %25 : vector<1x128xf32>
    %27 = vector.broadcast %23 : vector<1x128xf32> to vector<32x128xf32>
    %28 = arith.mulf %2, %27 : vector<32x128xf32>
    %29 = vector.broadcast %26 : vector<1x128xf32> to vector<32x128xf32>
    %30 = arith.addf %28, %29 : vector<32x128xf32>
    %cst_13 = arith.constant 2.000000e-01 : f32
    %31 = vector.broadcast %cst_13 : f32 to vector<32x128xf32>
    %32 = arith.mulf %31, %30 : vector<32x128xf32>
    %33 = arith.maximumf %30, %32 : vector<32x128xf32>
    %34 = arith.truncf %33 : vector<32x128xf32> to vector<32x128xbf16>
    %c0_14 = arith.constant 0 : index
    %c0_15 = arith.constant 0 : index
    %35 = vector.load %arg5[%c0_14, %c0_15] : memref<32x128xbf16, #tpu.memory_space<vmem>>, vector<32x128xbf16>
    tpu.vector_store %arg5[%c0_14, %c0_15], %34 {strides = array<i32>} : memref<32x128xbf16, #tpu.memory_space<vmem>>, vector<32x128xbf16>,
    return
  }
  func.func @transform_0(%arg0: i32) -> (i32, i32) {
    %c0_i32 = arith.constant 0 : i32
    %c0_i32_0 = arith.constant 0 : i32
    return %arg0, %c0_i32 : i32, i32
  }
  func.func @transform_1(%arg0: i32) -> (i32, i32) {
    %c0_i32 = arith.constant 0 : i32
    %c0_i32_0 = arith.constant 0 : i32
    %c0_i32_1 = arith.constant 0 : i32
    return %c0_i32, %c0_i32_0 : i32, i32
  }
  func.func @transform_2(%arg0: i32) -> (i32, i32) {
    %c0_i32 = arith.constant 0 : i32
    %c0_i32_0 = arith.constant 0 : i32
    %c0_i32_1 = arith.constant 0 : i32
    return %c0_i32, %c0_i32_0 : i32, i32
  }
  func.func @transform_3(%arg0: i32) -> (i32, i32) {
    %c0_i32 = arith.constant 0 : i32
    %c0_i32_0 = arith.constant 0 : i32
    %c0_i32_1 = arith.constant 0 : i32
    return %c0_i32, %c0_i32_0 : i32, i32
  }
  func.func @transform_4(%arg0: i32) -> (i32, i32) {
    %c0_i32 = arith.constant 0 : i32
    %c0_i32_0 = arith.constant 0 : i32
    return %arg0, %c0_i32 : i32, i32
  }
}

module attributes {stable_mosaic.version = 11 : i64} {
  func.func @_conv_act_kernel(%arg0: i32, %arg1: memref<16x256xbf16, #tpu.memory_space<vmem>>, %arg2: memref<256x128xbf16, #tpu.memory_space<vmem>>, %arg3: memref<16x128xf32, #tpu.memory_space<vmem>>) attributes {dimension_semantics = [#tpu.dimension_semantics<parallel>], iteration_bounds = array<i64: 1>, scalar_prefetch = 0 : i64, scratch_operands = 0 : i64, tpu.core_type = #tpu.core_type<tc>, window_params = [{transform_indices = @transform_0, window_bounds = array<i64: 16, 256>}, {pipeline_mode = #tpu.pipeline_mode<synchronous>, transform_indices = @transform_1, window_bounds = array<i64: 256, 128>}, {transform_indices = @transform_2, window_bounds = array<i64: 16, 128>}]} {
    %c0 = arith.constant 0 : index
    %c0_0 = arith.constant 0 : index
    %0 = vector.load %arg1[%c0, %c0_0] : memref<16x256xbf16, #tpu.memory_space<vmem>>, vector<16x256xbf16>
    %c0_1 = arith.constant 0 : index
    %c0_2 = arith.constant 0 : index
    %1 = vector.load %arg2[%c0_1, %c0_2] : memref<256x128xbf16, #tpu.memory_space<vmem>>, vector<256x128xbf16>
    %cst = arith.constant dense<0.000000e+00> : vector<16x128xf32>
    %2 = tpu.matmul %0, %1, %cst {dimension_numbers = #tpu.dot_dimension_numbers<[1], [0], [0], [1], [0, 0, 1, 1], [], []>} : vector<16x256xbf16>, vector<256x128xbf16>, vector<16x128xf32> -> vector<16x128xf32>
    %c0_3 = arith.constant 0 : index
    %c0_4 = arith.constant 0 : index
    %3 = vector.load %arg3[%c0_3, %c0_4] : memref<16x128xf32, #tpu.memory_space<vmem>>, vector<16x128xf32>
    tpu.vector_store %arg3[%c0_3, %c0_4], %2 {strides = array<i32>} : memref<16x128xf32, #tpu.memory_space<vmem>>, vector<16x128xf32>,
    return
  }
  func.func @transform_0(%arg0: i32) -> (i32, i32) {
    %c0_i32 = arith.constant 0 : i32
    %c0_i32_0 = arith.constant 0 : i32
    return %arg0, %c0_i32 : i32, i32
  }
  func.func @transform_1(%arg0: i32) -> (i32, i32) {
    %c0_i32 = arith.constant 0 : i32
    %c0_i32_0 = arith.constant 0 : i32
    %c0_i32_1 = arith.constant 0 : i32
    return %c0_i32, %c0_i32_0 : i32, i32
  }
  func.func @transform_2(%arg0: i32) -> (i32, i32) {
    %c0_i32 = arith.constant 0 : i32
    %c0_i32_0 = arith.constant 0 : i32
    return %arg0, %c0_i32 : i32, i32
  }
}

</mosaic_0001>

<llo_original>
// kernel: fwd.3
$region0: #{fwd.3}
  #allocation0 [shape = 'u32[]', space=smem, size = 0x4, offset = 0x4, fixed_abs, tag = 'smem constant byte address 0x4 - core index']
  #allocation1 [shape = 'u32[144,128]{1,0:T(1,128)}', space=vmem, size = 0x12000, scoped, tag = 'internal scratch']
  %s0 = inlined_call_operand.vmem [shape: bf16[128,128], index: 0, kind: input, shape index: {}]
  %s1 = inlined_call_operand.vmem [shape: bf16[128,128], index: 1, kind: input, shape index: {}]
  %s2 = inlined_call_operand.vmem [shape: bf16[128,128], index: 2, kind: output, shape index: {}]
  %s3 = sld [smem:[#allocation0]]
  $region18: #{fwd.3} parent=0
    _
  %s5 = ssub.s32 1, %s3
  %s6 = scalar_select 0, %s5, %s3
  // Predicated region
  $region2: #{fwd.3} parent=0 // pred_check
    _
  $region3: #{fwd.3} parent=0 // pred_check_branch
    %8 = sbr.rel (0) target = $region5
  $region4: #{fwd.3} parent=0 // pred_region
    _
  $region5: #{fwd.3} parent=0 // pred_fallthru
    _
  // Predicated region
  $region6: #{fwd.3} parent=0 // pred_check
    _
  $region7: #{fwd.3} parent=0 // pred_check_branch
    %10 = sbr.rel (0) target = $region9
  $region8: #{fwd.3} parent=0 // pred_region
    _
  $region9: #{fwd.3} parent=0 // pred_fallthru
    _
  %v12 = vld [vmem:[%s0] sm:$0xf]
  %v13 = vld [vmem:[%s0 + $0x4] sm:$0xf]
  %v14 = vld [vmem:[%s0 + $0x8] sm:$0xf]
  %v15 = vld [vmem:[%s0 + $0xc] sm:$0xf]
  %v16 = vld [vmem:[%s0 + $0x10] sm:$0xf]
  %v17 = vld [vmem:[%s0 + $0x14] sm:$0xf]
  %v18 = vld [vmem:[%s0 + $0x18] sm:$0xf]
  %v19 = vld [vmem:[%s0 + $0x1c] sm:$0xf]
  %v20 = vld [vmem:[%s0 + $0x20] sm:$0xf]
  %v21 = vld [vmem:[%s0 + $0x24] sm:$0xf]
  %v22 = vld [vmem:[%s0 + $0x28] sm:$0xf]
  %v23 = vld [vmem:[%s0 + $0x2c] sm:$0xf]
  %v24 = vld [vmem:[%s0 + $0x30] sm:$0xf]
  %v25 = vld [vmem:[%s0 + $0x34] sm:$0xf]
  %v26 = vld [vmem:[%s0 + $0x38] sm:$0xf]
  %v27 = vld [vmem:[%s0 + $0x3c] sm:$0xf]
  %v28 = vld [vmem:[%s1] sm:$0xf]
  %v29 = vld [vmem:[%s1 + $0x4] sm:$0xf]
  %v30 = vld [vmem:[%s1 + $0x8] sm:$0xf]
  %v31 = vld [vmem:[%s1 + $0xc] sm:$0xf]
  %v32 = vld [vmem:[%s1 + $0x10] sm:$0xf]
  %v33 = vld [vmem:[%s1 + $0x14] sm:$0xf]
  %v34 = vld [vmem:[%s1 + $0x18] sm:$0xf]
  %v35 = vld [vmem:[%s1 + $0x1c] sm:$0xf]
  %v36 = vld [vmem:[%s1 + $0x20] sm:$0xf]
  %v37 = vld [vmem:[%s1 + $0x24] sm:$0xf]
  %v38 = vld [vmem:[%s1 + $0x28] sm:$0xf]
  %v39 = vld [vmem:[%s1 + $0x2c] sm:$0xf]
  %v40 = vld [vmem:[%s1 + $0x30] sm:$0xf]
  %v41 = vld [vmem:[%s1 + $0x34] sm:$0xf]
  %v42 = vld [vmem:[%s1 + $0x38] sm:$0xf]
  %v43 = vld [vmem:[%s1 + $0x3c] sm:$0xf]
  %v60 = vunpack.c.l.b16 %v12
  %v61 = vunpack.c.l.b16 %v13
  %v62 = vunpack.c.l.b16 %v14
  %v63 = vunpack.c.l.b16 %v15
  %v64 = vunpack.c.l.b16 %v16
  %v65 = vunpack.c.l.b16 %v17
  %v66 = vunpack.c.l.b16 %v18
  %v67 = vunpack.c.l.b16 %v19
  %v68 = vunpack.c.l.b16 %v20
  %v69 = vunpack.c.l.b16 %v21
  %v70 = vunpack.c.l.b16 %v22
  %v71 = vunpack.c.l.b16 %v23
  %v72 = vunpack.c.l.b16 %v24
  %v73 = vunpack.c.l.b16 %v25
  %v74 = vunpack.c.l.b16 %v26
  %v75 = vunpack.c.l.b16 %v27
  %v76 = vpack.c.b16 %v61, %v60
  %v77 = vpack.c.b16 %v63, %v62
  %v78 = vpack.c.b16 %v65, %v64
  %v79 = vpack.c.b16 %v67, %v66
  %v80 = vpack.c.b16 %v69, %v68
  %v81 = vpack.c.b16 %v71, %v70
  %v82 = vpack.c.b16 %v73, %v72
  %v83 = vpack.c.b16 %v75, %v74
  %v108 = vunpack.c.l.b16 %v28
  %v109 = vunpack.c.l.b16 %v29
  %v110 = vunpack.c.l.b16 %v30
  %v111 = vunpack.c.l.b16 %v31
  %v112 = vunpack.c.l.b16 %v32
  %v113 = vunpack.c.l.b16 %v33
  %v114 = vunpack.c.l.b16 %v34
  %v115 = vunpack.c.l.b16 %v35
  %v116 = vunpack.c.l.b16 %v36
  %v117 = vunpack.c.l.b16 %v37
  %v118 = vunpack.c.l.b16 %v38
  %v119 = vunpack.c.l.b16 %v39
  %v120 = vunpack.c.l.b16 %v40
  %v121 = vunpack.c.l.b16 %v41
  %v122 = vunpack.c.l.b16 %v42
  %v123 = vunpack.c.l.b16 %v43
  %v124 = vpack.c.b16 %v109, %v108
  %v125 = vpack.c.b16 %v111, %v110
  %v126 = vpack.c.b16 %v113, %v112
  %v127 = vpack.c.b16 %v115, %v114
  %v128 = vpack.c.b16 %v117, %v116
  %v129 = vpack.c.b16 %v119, %v118
  %v130 = vpack.c.b16 %v121, %v120
  %v131 = vpack.c.b16 %v123, %v122
  %140 = vmatprep.subr.bf16.mxu0 0
  %141 = vmatpush1.bf16.msra.mxu0 %v124
  %142 = vmatprep.subr.bf16.mxu0 0
  %143 = vmatpush1.bf16.msra.mxu0 %v125
  %144 = vmatprep.subr.bf16.mxu0 0
  %145 = vmatpush1.bf16.msra.mxu0 %v126
  %146 = vmatprep.subr.bf16.mxu0 0
  %147 = vmatpush1.bf16.msra.mxu0 %v127
  %148 = vmatprep.subr.bf16.mxu0 0
  %149 = vmatpush1.bf16.msra.mxu0 %v128
  %150 = vmatprep.subr.bf16.mxu0 0
  %151 = vmatpush1.bf16.msra.mxu0 %v129
  %152 = vmatprep.subr.bf16.mxu0 0
  %153 = vmatpush1.bf16.msra.mxu0 %v130
  %154 = vmatprep.subr.bf16.mxu0 0
  %155 = vmatpush1.bf16.msra.mxu0 %v131
  %156 = vmatprep.subr.bf16.mxu0 0
  %157 = vmatpush1.bf16.msra.mxu0 0
  %158 = vmatprep.subr.bf16.mxu0 0
  %159 = vmatpush1.bf16.msra.mxu0 0
  %160 = vmatprep.subr.bf16.mxu0 0
  %161 = vmatpush1.bf16.msra.mxu0 0
  %162 = vmatprep.subr.bf16.mxu0 0
  %163 = vmatpush1.bf16.msra.mxu0 0
  %164 = vmatprep.subr.bf16.mxu0 0
  %165 = vmatpush1.bf16.msra.mxu0 0
  %166 = vmatprep.subr.bf16.mxu0 0
  %167 = vmatpush1.bf16.msra.mxu0 0
  %168 = vmatprep.subr.bf16.mxu0 0
  %169 = vmatpush1.bf16.msra.mxu0 0
  %170 = vmatprep.subr.bf16.mxu0 0
  %171 = vmatpush1.bf16.msra.mxu0 0
  %172 = vmatprep.mubr.bf16.mxu0 0
  %173 = vmatmul.mubr.bf16.gmra.mrb[0].mxu0 %v76
  %v174 = vpop.f32.mrb[0].mxu0
  %v175 = vadd.f32 0.0, %v174
  %v176 = vpop.f32.mrb[0].mxu0
  %v177 = vpop.f32.mrb[0].mxu0
  %v178 = vadd.f32 0.0, %v177
  %v179 = vpop.f32.mrb[0].mxu0
  %180 = vmatprep.mubr.bf16.mxu0 0
  %181 = vmatmul.mubr.bf16.gmra.mrb[0].mxu0 %v77
  %v182 = vpop.f32.mrb[0].mxu0
  %v183 = vadd.f32 0.0, %v182
  %v184 = vpop.f32.mrb[0].mxu0
  %v185 = vpop.f32.mrb[0].mxu0
  %v186 = vadd.f32 0.0, %v185
  %v187 = vpop.f32.mrb[0].mxu0
  %188 = vmatprep.mubr.bf16.mxu0 0
  %189 = vmatmul.mubr.bf16.gmra.mrb[0].mxu0 %v78
  %v190 = vpop.f32.mrb[0].mxu0
  %v191 = vadd.f32 0.0, %v190
  %v192 = vpop.f32.mrb[0].mxu0
  %v193 = vpop.f32.mrb[0].mxu0
  %v194 = vadd.f32 0.0, %v193
  %v195 = vpop.f32.mrb[0].mxu0
  %196 = vmatprep.mubr.bf16.mxu0 0
  %197 = vmatmul.mubr.bf16.gmra.mrb[0].mxu0 %v79
  %v198 = vpop.f32.mrb[0].mxu0
  %v199 = vadd.f32 0.0, %v198
  %v200 = vpop.f32.mrb[0].mxu0
  %v201 = vpop.f32.mrb[0].mxu0
  %v202 = vadd.f32 0.0, %v201
  %v203 = vpop.f32.mrb[0].mxu0
  %204 = vmatprep.mubr.bf16.mxu0 0
  %205 = vmatmul.mubr.bf16.gmra.mrb[0].mxu0 %v80
  %v206 = vpop.f32.mrb[0].mxu0
  %v207 = vadd.f32 0.0, %v206
  %v208 = vpop.f32.mrb[0].mxu0
  %v209 = vpop.f32.mrb[0].mxu0
  %v210 = vadd.f32 0.0, %v209
  %v211 = vpop.f32.mrb[0].mxu0
  %212 = vmatprep.mubr.bf16.mxu0 0
  %213 = vmatmul.mubr.bf16.gmra.mrb[0].mxu0 %v81
  %v214 = vpop.f32.mrb[0].mxu0
  %v215 = vadd.f32 0.0, %v214
  %v216 = vpop.f32.mrb[0].mxu0
  %v217 = vpop.f32.mrb[0].mxu0
  %v218 = vadd.f32 0.0, %v217
  %v219 = vpop.f32.mrb[0].mxu0
  %220 = vmatprep.mubr.bf16.mxu0 0
  %221 = vmatmul.mubr.bf16.gmra.mrb[0].mxu0 %v82
  %v222 = vpop.f32.mrb[0].mxu0
  %v223 = vadd.f32 0.0, %v222
  %v224 = vpop.f32.mrb[0].mxu0
  %v225 = vpop.f32.mrb[0].mxu0
  %v226 = vadd.f32 0.0, %v225
  %v227 = vpop.f32.mrb[0].mxu0
  %228 = vmatprep.mubr.bf16.mxu0 0
  %229 = vmatmul.mubr.bf16.gmra.mrb[0].mxu0 %v83
  %v230 = vpop.f32.mrb[0].mxu0
  %v231 = vadd.f32 0.0, %v230
  %v232 = vpop.f32.mrb[0].mxu0
  %v233 = vpop.f32.mrb[0].mxu0
  %v234 = vadd.f32 0.0, %v233
  %v235 = vpop.f32.mrb[0].mxu0
  %236 = vdwg.mxu0
  %v237 = vmul.f32 %v175, 0.2
  %v238 = vmul.f32 %v178, 0.2
  %v239 = vmul.f32 %v183, 0.2
  %v240 = vmul.f32 %v186, 0.2
  %v241 = vmul.f32 %v191, 0.2
  %v242 = vmul.f32 %v194, 0.2
  %v243 = vmul.f32 %v199, 0.2
  %v244 = vmul.f32 %v202, 0.2
  %v245 = vmul.f32 %v207, 0.2
  %v246 = vmul.f32 %v210, 0.2
  %v247 = vmul.f32 %v215, 0.2
  %v248 = vmul.f32 %v218, 0.2
  %v249 = vmul.f32 %v223, 0.2
  %v250 = vmul.f32 %v226, 0.2
  %v251 = vmul.f32 %v231, 0.2
  %v252 = vmul.f32 %v234, 0.2
  %v253 = vmax.f32 %v175, %v237
  %v254 = vmax.f32 %v178, %v238
  %v255 = vmax.f32 %v183, %v239
  %v256 = vmax.f32 %v186, %v240
  %v257 = vmax.f32 %v191, %v241
  %v258 = vmax.f32 %v194, %v242
  %v259 = vmax.f32 %v199, %v243
  %v260 = vmax.f32 %v202, %v244
  %v261 = vmax.f32 %v207, %v245
  %v262 = vmax.f32 %v210, %v246
  %v263 = vmax.f32 %v215, %v247
  %v264 = vmax.f32 %v218, %v248
  %v265 = vmax.f32 %v223, %v249
  %v266 = vmax.f32 %v226, %v250
  %v267 = vmax.f32 %v231, %v251
  %v268 = vmax.f32 %v234, %v252
  %v269 = vpack.c.bf16 %v254, %v253
  %v270 = vpack.c.bf16 %v256, %v255
  %v271 = vpack.c.bf16 %v258, %v257
  %v272 = vpack.c.bf16 %v260, %v259
  %v273 = vpack.c.bf16 %v262, %v261
  %v274 = vpack.c.bf16 %v264, %v263
  %v275 = vpack.c.bf16 %v266, %v265
  %v276 = vpack.c.bf16 %v268, %v267
  %v285 = vunpack.c.l.b16 %v269
  %v286 = vunpack.c.h.b16 %v269
  %v287 = vunpack.c.l.b16 %v270
  %v288 = vunpack.c.h.b16 %v270
  %v289 = vunpack.c.l.b16 %v271
  %v290 = vunpack.c.h.b16 %v271
  %v291 = vunpack.c.l.b16 %v272
  %v292 = vunpack.c.h.b16 %v272
  %v293 = vunpack.c.l.b16 %v273
  %v294 = vunpack.c.h.b16 %v273
  %v295 = vunpack.c.l.b16 %v274
  %v296 = vunpack.c.h.b16 %v274
  %v297 = vunpack.c.l.b16 %v275
  %v298 = vunpack.c.h.b16 %v275
  %v299 = vunpack.c.l.b16 %v276
  %v300 = vunpack.c.h.b16 %v276
  %v301 = vpack.c.b16 %v285, %v285
  %v302 = vpack.c.b16 %v286, %v286
  %v303 = vpack.c.b16 %v287, %v287
  %v304 = vpack.c.b16 %v288, %v288
  %v305 = vpack.c.b16 %v289, %v289
  %v306 = vpack.c.b16 %v290, %v290
  %v307 = vpack.c.b16 %v291, %v291
  %v308 = vpack.c.b16 %v292, %v292
  %v309 = vpack.c.b16 %v293, %v293
  %v310 = vpack.c.b16 %v294, %v294
  %v311 = vpack.c.b16 %v295, %v295
  %v312 = vpack.c.b16 %v296, %v296
  %v313 = vpack.c.b16 %v297, %v297
  %v314 = vpack.c.b16 %v298, %v298
  %v315 = vpack.c.b16 %v299, %v299
  %v316 = vpack.c.b16 %v300, %v300
  %333 = vst [vmem:[%s2] sm:$0xf] %v301
  %334 = vst [vmem:[%s2 + $0x4] sm:$0xf] %v302
  %335 = vst [vmem:[%s2 + $0x8] sm:$0xf] %v303
  %336 = vst [vmem:[%s2 + $0xc] sm:$0xf] %v304
  %337 = vst [vmem:[%s2 + $0x10] sm:$0xf] %v305
  %338 = vst [vmem:[%s2 + $0x14] sm:$0xf] %v306
  %339 = vst [vmem:[%s2 + $0x18] sm:$0xf] %v307
  %340 = vst [vmem:[%s2 + $0x1c] sm:$0xf] %v308
  %341 = vst [vmem:[%s2 + $0x20] sm:$0xf] %v309
  %342 = vst [vmem:[%s2 + $0x24] sm:$0xf] %v310
  %343 = vst [vmem:[%s2 + $0x28] sm:$0xf] %v311
  %344 = vst [vmem:[%s2 + $0x2c] sm:$0xf] %v312
  %345 = vst [vmem:[%s2 + $0x30] sm:$0xf] %v313
  %346 = vst [vmem:[%s2 + $0x34] sm:$0xf] %v314
  %347 = vst [vmem:[%s2 + $0x38] sm:$0xf] %v315
  %348 = vst [vmem:[%s2 + $0x3c] sm:$0xf] %v316
  // Predicated region
  $region10: #{fwd.3} parent=0 // pred_check
    _
  $region11: #{fwd.3} parent=0 // pred_check_branch
    %350 = sbr.rel (0) target = $region13
  $region12: #{fwd.3} parent=0 // pred_region
    _
  $region13: #{fwd.3} parent=0 // pred_fallthru
    _
  // Predicated region
  $region14: #{fwd.3} parent=0 // pred_check
    _
  $region15: #{fwd.3} parent=0 // pred_check_branch
    %352 = sbr.rel (0) target = $region17
  $region16: #{fwd.3} parent=0 // pred_region
    _
  $region17: #{fwd.3} parent=0 // pred_fallthru
    _

// kernel: fwd.4
$region0: #{fwd.4}
  #allocation0 [shape = 'u32[]', space=smem, size = 0x4, offset = 0x4, fixed_abs, tag = 'smem constant byte address 0x4 - core index']
  #allocation1 [shape = 'u32[144,128]{1,0:T(1,128)}', space=vmem, size = 0x12000, scoped, tag = 'internal scratch']
  %s0 = inlined_call_operand.vmem [shape: bf16[32,128], index: 0, kind: input, shape index: {}]
  %s1 = inlined_call_operand.vmem [shape: bf16[128,128], index: 1, kind: input, shape index: {}]
  %s2 = inlined_call_operand.vmem [shape: f32[1,128], index: 2, kind: input, shape index: {}]
  %s3 = inlined_call_operand.vmem [shape: f32[1,128], index: 3, kind: input, shape index: {}]
  %s4 = inlined_call_operand.vmem [shape: bf16[32,128], index: 4, kind: output, shape index: {}]
  %s5 = sld [smem:[#allocation0]]
  $region26: #{fwd.4} parent=0
    _
  %s7 = ssub.s32 1, %s5
  %s8 = scalar_select 0, %s7, %s5
  // Predicated region
  $region2: #{fwd.4} parent=0 // pred_check
    _
  $region3: #{fwd.4} parent=0 // pred_check_branch
    %10 = sbr.rel (0) target = $region5
  $region4: #{fwd.4} parent=0 // pred_region
    _
  $region5: #{fwd.4} parent=0 // pred_fallthru
    _
  // Predicated region
  $region6: #{fwd.4} parent=0 // pred_check
    _
  $region7: #{fwd.4} parent=0 // pred_check_branch
    %12 = sbr.rel (0) target = $region9
  $region8: #{fwd.4} parent=0 // pred_region
    _
  $region9: #{fwd.4} parent=0 // pred_fallthru
    _
  // Predicated region
  $region10: #{fwd.4} parent=0 // pred_check
    _
  $region11: #{fwd.4} parent=0 // pred_check_branch
    %14 = sbr.rel (0) target = $region13
  $region12: #{fwd.4} parent=0 // pred_region
    _
  $region13: #{fwd.4} parent=0 // pred_fallthru
    _
  // Predicated region
  $region14: #{fwd.4} parent=0 // pred_check
    _
  $region15: #{fwd.4} parent=0 // pred_check_branch
    %16 = sbr.rel (0) target = $region17
  $region16: #{fwd.4} parent=0 // pred_region
    _
  $region17: #{fwd.4} parent=0 // pred_fallthru
    _
  %v18 = vld [vmem:[%s0] sm:$0xf]
  %v19 = vld [vmem:[%s0 + $0x4] sm:$0xf]
  %v20 = vld [vmem:[%s0 + $0x8] sm:$0xf]
  %v21 = vld [vmem:[%s0 + $0xc] sm:$0xf]
  %v22 = vld [vmem:[%s1] sm:$0xf]
  %v23 = vld [vmem:[%s1 + $0x4] sm:$0xf]
  %v24 = vld [vmem:[%s1 + $0x8] sm:$0xf]
  %v25 = vld [vmem:[%s1 + $0xc] sm:$0xf]
  %v26 = vld [vmem:[%s1 + $0x10] sm:$0xf]
  %v27 = vld [vmem:[%s1 + $0x14] sm:$0xf]
  %v28 = vld [vmem:[%s1 + $0x18] sm:$0xf]
  %v29 = vld [vmem:[%s1 + $0x1c] sm:$0xf]
  %v30 = vld [vmem:[%s1 + $0x20] sm:$0xf]
  %v31 = vld [vmem:[%s1 + $0x24] sm:$0xf]
  %v32 = vld [vmem:[%s1 + $0x28] sm:$0xf]
  %v33 = vld [vmem:[%s1 + $0x2c] sm:$0xf]
  %v34 = vld [vmem:[%s1 + $0x30] sm:$0xf]
  %v35 = vld [vmem:[%s1 + $0x34] sm:$0xf]
  %v36 = vld [vmem:[%s1 + $0x38] sm:$0xf]
  %v37 = vld [vmem:[%s1 + $0x3c] sm:$0xf]
  %v42 = vunpack.c.l.b16 %v18
  %v43 = vunpack.c.l.b16 %v19
  %v44 = vunpack.c.l.b16 %v20
  %v45 = vunpack.c.l.b16 %v21
  %v46 = vpack.c.b16 %v43, %v42
  %v47 = vpack.c.b16 %v45, %v44
  %v66 = vunpack.c.l.b16 %v22
  %v67 = vunpack.c.l.b16 %v23
  %v68 = vunpack.c.l.b16 %v24
  %v69 = vunpack.c.l.b16 %v25
  %v70 = vunpack.c.l.b16 %v26
  %v71 = vunpack.c.l.b16 %v27
  %v72 = vunpack.c.l.b16 %v28
  %v73 = vunpack.c.l.b16 %v29
  %v74 = vunpack.c.l.b16 %v30
  %v75 = vunpack.c.l.b16 %v31
  %v76 = vunpack.c.l.b16 %v32
  %v77 = vunpack.c.l.b16 %v33
  %v78 = vunpack.c.l.b16 %v34
  %v79 = vunpack.c.l.b16 %v35
  %v80 = vunpack.c.l.b16 %v36
  %v81 = vunpack.c.l.b16 %v37
  %v82 = vpack.c.b16 %v67, %v66
  %v83 = vpack.c.b16 %v69, %v68
  %v84 = vpack.c.b16 %v71, %v70
  %v85 = vpack.c.b16 %v73, %v72
  %v86 = vpack.c.b16 %v75, %v74
  %v87 = vpack.c.b16 %v77, %v76
  %v88 = vpack.c.b16 %v79, %v78
  %v89 = vpack.c.b16 %v81, %v80
  %98 = vmatprep.subr.bf16.mxu0 0
  %99 = vmatpush1.bf16.msra.mxu0 %v82
  %100 = vmatprep.subr.bf16.mxu0 0
  %101 = vmatpush1.bf16.msra.mxu0 %v83
  %102 = vmatprep.subr.bf16.mxu0 0
  %103 = vmatpush1.bf16.msra.mxu0 %v84
  %104 = vmatprep.subr.bf16.mxu0 0
  %105 = vmatpush1.bf16.msra.mxu0 %v85
  %106 = vmatprep.subr.bf16.mxu0 0
  %107 = vmatpush1.bf16.msra.mxu0 %v86
  %108 = vmatprep.subr.bf16.mxu0 0
  %109 = vmatpush1.bf16.msra.mxu0 %v87
  %110 = vmatprep.subr.bf16.mxu0 0
  %111 = vmatpush1.bf16.msra.mxu0 %v88
  %112 = vmatprep.subr.bf16.mxu0 0
  %113 = vmatpush1.bf16.msra.mxu0 %v89
  %114 = vmatprep.subr.bf16.mxu0 0
  %115 = vmatpush1.bf16.msra.mxu0 0
  %116 = vmatprep.subr.bf16.mxu0 0
  %117 = vmatpush1.bf16.msra.mxu0 0
  %118 = vmatprep.subr.bf16.mxu0 0
  %119 = vmatpush1.bf16.msra.mxu0 0
  %120 = vmatprep.subr.bf16.mxu0 0
  %121 = vmatpush1.bf16.msra.mxu0 0
  %122 = vmatprep.subr.bf16.mxu0 0
  %123 = vmatpush1.bf16.msra.mxu0 0
  %124 = vmatprep.subr.bf16.mxu0 0
  %125 = vmatpush1.bf16.msra.mxu0 0
  %126 = vmatprep.subr.bf16.mxu0 0
  %127 = vmatpush1.bf16.msra.mxu0 0
  %128 = vmatprep.subr.bf16.mxu0 0
  %129 = vmatpush1.bf16.msra.mxu0 0
  %130 = vmatprep.mubr.bf16.mxu0 0
  %131 = vmatmul.mubr.bf16.gmra.mrb[0].mxu0 %v46
  %v132 = vpop.f32.mrb[0].mxu0
  %v133 = vadd.f32 0.0, %v132
  %v134 = vpop.f32.mrb[0].mxu0
  %v135 = vpop.f32.mrb[0].mxu0
  %v136 = vadd.f32 0.0, %v135
  %v137 = vpop.f32.mrb[0].mxu0
  %138 = vmatprep.mubr.bf16.mxu0 0
  %139 = vmatmul.mubr.bf16.gmra.mrb[0].mxu0 %v47
  %v140 = vpop.f32.mrb[0].mxu0
  %v141 = vadd.f32 0.0, %v140
  %v142 = vpop.f32.mrb[0].mxu0
  %v143 = vpop.f32.mrb[0].mxu0
  %v144 = vadd.f32 0.0, %v143
  %v145 = vpop.f32.mrb[0].mxu0
  %146 = vdwg.mxu0
  %v147 = vadd.f32 %v133, %v136
  %v148 = vadd.f32 %v147, %v141
  %v149 = vadd.f32 %v148, %v144
  %v150 = vrot.slane %v149, 4
  %v151 = vadd.f32 %v149, %v150
  %v152 = vrot.slane %v151, 2
  %v153 = vadd.f32 %v151, %v152
  %v154 = vrot.slane %v153, 1
  %v155 = vadd.f32 %v153, %v154
  %v156 = vmul.f32 %v155, 0.03125
  %v157 = vlaneseq
  %v158 = vshrl.u32 %v157, 7
  %v159 = vadd.s32 %v158, 8
  %v160 = vadd.s32 %v158, 16
  %v161 = vadd.s32 %v158, 24
  %vm162 = vcmp.lt.s32.totalorder %v158, 32
  %vm163 = vcmp.lt.s32.totalorder %v159, 32
  %vm164 = vcmp.lt.s32.totalorder %v160, 32
  %vm165 = vcmp.lt.s32.totalorder %v161, 32
  %v166 = vsub.f32 %v133, %v156
  %v167 = vsub.f32 %v136, %v156
  %v168 = vsub.f32 %v141, %v156
  %v169 = vsub.f32 %v144, %v156
  %v170 = vsel %vm162, %v166, 0.0
  %v171 = vsel %vm163, %v167, 0.0
  %v172 = vsel %vm164, %v168, 0.0
  %v173 = vsel %vm165, %v169, 0.0
  %v174 = vmul.f32 %v170, %v170
  %v175 = vmul.f32 %v171, %v171
  %v176 = vmul.f32 %v172, %v172
  %v177 = vmul.f32 %v173, %v173
  %v178 = vadd.f32 %v174, %v175
  %v179 = vadd.f32 %v178, %v176
  %v180 = vadd.f32 %v179, %v177
  %v181 = vrot.slane %v180, 4
  %v182 = vadd.f32 %v180, %v181
  %v183 = vrot.slane %v182, 2
  %v184 = vadd.f32 %v182, %v183
  %v185 = vrot.slane %v184, 1
  %v186 = vadd.f32 %v184, %v185
  %v187 = vmul.f32 %v186, 0.03125
  %v188 = vld [vmem:[%s2] sm:$0x1]
  %v189 = vadd.f32 %v187, 1e-05
  %v190 = vrsqrt.pop %v189
  %v191 = vmul.f32 %v188, %v190
  %v192 = vld [vmem:[%s3] sm:$0x1]
  %v193 = vmul.f32 %v156, %v191
  %v194 = vsub.f32 %v192, %v193
  %v196 = vlaneseq
  %v197 = vshrl.u32 %v196, 7
  %v198 = vsub.s32 0, %v197
  %v199 = vrot.slane %v191, %v198
  %v201 = vmul.f32 %v133, %v199
  %v202 = vmul.f32 %v136, %v199
  %v203 = vmul.f32 %v141, %v199
  %v204 = vmul.f32 %v144, %v199
  %v206 = vlaneseq
  %v207 = vshrl.u32 %v206, 7
  %v208 = vsub.s32 0, %v207
  %v209 = vrot.slane %v194, %v208
  %v211 = vadd.f32 %v201, %v209
  %v212 = vadd.f32 %v202, %v209
  %v213 = vadd.f32 %v203, %v209
  %v214 = vadd.f32 %v204, %v209
  %v215 = vmul.f32 %v211, 0.2
  %v216 = vmul.f32 %v212, 0.2
  %v217 = vmul.f32 %v213, 0.2
  %v218 = vmul.f32 %v214, 0.2
  %v219 = vmax.f32 %v211, %v215
  %v220 = vmax.f32 %v212, %v216
  %v221 = vmax.f32 %v213, %v217
  %v222 = vmax.f32 %v214, %v218
  %v223 = vpack.c.bf16 %v220, %v219
  %v224 = vpack.c.bf16 %v222, %v221
  %v227 = vunpack.c.l.b16 %v223
  %v228 = vunpack.c.h.b16 %v223
  %v229 = vunpack.c.l.b16 %v224
  %v230 = vunpack.c.h.b16 %v224
  %v231 = vpack.c.b16 %v227, %v227
  %v232 = vpack.c.b16 %v228, %v228
  %v233 = vpack.c.b16 %v229, %v229
  %v234 = vpack.c.b16 %v230, %v230
  %239 = vst [vmem:[%s4] sm:$0xf] %v231
  %240 = vst [vmem:[%s4 + $0x4] sm:$0xf] %v232
  %241 = vst [vmem:[%s4 + $0x8] sm:$0xf] %v233
  %242 = vst [vmem:[%s4 + $0xc] sm:$0xf] %v234
  // Predicated region
  $region18: #{fwd.4} parent=0 // pred_check
    _
  $region19: #{fwd.4} parent=0 // pred_check_branch
    %244 = sbr.rel (0) target = $region21
  $region20: #{fwd.4} parent=0 // pred_region
    _
  $region21: #{fwd.4} parent=0 // pred_fallthru
    _
  // Predicated region
  $region22: #{fwd.4} parent=0 // pred_check
    _
  $region23: #{fwd.4} parent=0 // pred_check_branch
    %246 = sbr.rel (0) target = $region25
  $region24: #{fwd.4} parent=0 // pred_region
    _
  $region25: #{fwd.4} parent=0 // pred_fallthru
    _

// kernel: fwd.5
$region0: #{fwd.5}
  #allocation0 [shape = 'u32[]', space=smem, size = 0x4, offset = 0x4, fixed_abs, tag = 'smem constant byte address 0x4 - core index']
  #allocation1 [shape = 'u32[144,128]{1,0:T(1,128)}', space=vmem, size = 0x12000, scoped, tag = 'internal scratch']
  %s0 = inlined_call_operand.vmem [shape: bf16[16,256], index: 0, kind: input, shape index: {}]
  %s1 = inlined_call_operand.vmem [shape: bf16[256,128], index: 1, kind: input, shape index: {}]
  %s2 = inlined_call_operand.vmem [shape: f32[16,128], index: 2, kind: output, shape index: {}]
  %s3 = sld [smem:[#allocation0]]
  $region18: #{fwd.5} parent=0
    _
  %s5 = ssub.s32 1, %s3
  %s6 = scalar_select 0, %s5, %s3
  // Predicated region
  $region2: #{fwd.5} parent=0 // pred_check
    _
  $region3: #{fwd.5} parent=0 // pred_check_branch
    %8 = sbr.rel (0) target = $region5
  $region4: #{fwd.5} parent=0 // pred_region
    _
  $region5: #{fwd.5} parent=0 // pred_fallthru
    _
  // Predicated region
  $region6: #{fwd.5} parent=0 // pred_check
    _
  $region7: #{fwd.5} parent=0 // pred_check_branch
    %10 = sbr.rel (0) target = $region9
  $region8: #{fwd.5} parent=0 // pred_region
    _
  $region9: #{fwd.5} parent=0 // pred_fallthru
    _
  %v12 = vld [vmem:[%s0] sm:$0xff]
  %v13 = vld [vmem:[%s0 + $0x8] sm:$0xff]
  %v14 = vld [vmem:[%s1] sm:$0xf]
  %v15 = vld [vmem:[%s1 + $0x4] sm:$0xf]
  %v16 = vld [vmem:[%s1 + $0x8] sm:$0xf]
  %v17 = vld [vmem:[%s1 + $0xc] sm:$0xf]
  %v18 = vld [vmem:[%s1 + $0x10] sm:$0xf]
  %v19 = vld [vmem:[%s1 + $0x14] sm:$0xf]
  %v20 = vld [vmem:[%s1 + $0x18] sm:$0xf]
  %v21 = vld [vmem:[%s1 + $0x1c] sm:$0xf]
  %v22 = vld [vmem:[%s1 + $0x20] sm:$0xf]
  %v23 = vld [vmem:[%s1 + $0x24] sm:$0xf]
  %v24 = vld [vmem:[%s1 + $0x28] sm:$0xf]
  %v25 = vld [vmem:[%s1 + $0x2c] sm:$0xf]
  %v26 = vld [vmem:[%s1 + $0x30] sm:$0xf]
  %v27 = vld [vmem:[%s1 + $0x34] sm:$0xf]
  %v28 = vld [vmem:[%s1 + $0x38] sm:$0xf]
  %v29 = vld [vmem:[%s1 + $0x3c] sm:$0xf]
  %v30 = vld [vmem:[%s1 + $0x40] sm:$0xf]
  %v31 = vld [vmem:[%s1 + $0x44] sm:$0xf]
  %v32 = vld [vmem:[%s1 + $0x48] sm:$0xf]
  %v33 = vld [vmem:[%s1 + $0x4c] sm:$0xf]
  %v34 = vld [vmem:[%s1 + $0x50] sm:$0xf]
  %v35 = vld [vmem:[%s1 + $0x54] sm:$0xf]
  %v36 = vld [vmem:[%s1 + $0x58] sm:$0xf]
  %v37 = vld [vmem:[%s1 + $0x5c] sm:$0xf]
  %v38 = vld [vmem:[%s1 + $0x60] sm:$0xf]
  %v39 = vld [vmem:[%s1 + $0x64] sm:$0xf]
  %v40 = vld [vmem:[%s1 + $0x68] sm:$0xf]
  %v41 = vld [vmem:[%s1 + $0x6c] sm:$0xf]
  %v42 = vld [vmem:[%s1 + $0x70] sm:$0xf]
  %v43 = vld [vmem:[%s1 + $0x74] sm:$0xf]
  %v44 = vld [vmem:[%s1 + $0x78] sm:$0xf]
  %v45 = vld [vmem:[%s1 + $0x7c] sm:$0xf]
  %v48 = vunpack.c.l.b16 %v12
  %v49 = vunpack.c.h.b16 %v12
  %v50 = vunpack.c.l.b16 %v13
  %v51 = vunpack.c.h.b16 %v13
  %v52 = vpack.c.b16 %v50, %v48
  %v53 = vpack.c.b16 %v51, %v49
  %v88 = vunpack.c.l.b16 %v14
  %v89 = vunpack.c.l.b16 %v15
  %v90 = vunpack.c.l.b16 %v16
  %v91 = vunpack.c.l.b16 %v17
  %v92 = vunpack.c.l.b16 %v18
  %v93 = vunpack.c.l.b16 %v19
  %v94 = vunpack.c.l.b16 %v20
  %v95 = vunpack.c.l.b16 %v21
  %v96 = vunpack.c.l.b16 %v22
  %v97 = vunpack.c.l.b16 %v23
  %v98 = vunpack.c.l.b16 %v24
  %v99 = vunpack.c.l.b16 %v25
  %v100 = vunpack.c.l.b16 %v26
  %v101 = vunpack.c.l.b16 %v27
  %v102 = vunpack.c.l.b16 %v28
  %v103 = vunpack.c.l.b16 %v29
  %v104 = vunpack.c.l.b16 %v30
  %v105 = vunpack.c.l.b16 %v31
  %v106 = vunpack.c.l.b16 %v32
  %v107 = vunpack.c.l.b16 %v33
  %v108 = vunpack.c.l.b16 %v34
  %v109 = vunpack.c.l.b16 %v35
  %v110 = vunpack.c.l.b16 %v36
  %v111 = vunpack.c.l.b16 %v37
  %v112 = vunpack.c.l.b16 %v38
  %v113 = vunpack.c.l.b16 %v39
  %v114 = vunpack.c.l.b16 %v40
  %v115 = vunpack.c.l.b16 %v41
  %v116 = vunpack.c.l.b16 %v42
  %v117 = vunpack.c.l.b16 %v43
  %v118 = vunpack.c.l.b16 %v44
  %v119 = vunpack.c.l.b16 %v45
  %v120 = vpack.c.b16 %v89, %v88
  %v121 = vpack.c.b16 %v91, %v90
  %v122 = vpack.c.b16 %v93, %v92
  %v123 = vpack.c.b16 %v95, %v94
  %v124 = vpack.c.b16 %v97, %v96
  %v125 = vpack.c.b16 %v99, %v98
  %v126 = vpack.c.b16 %v101, %v100
  %v127 = vpack.c.b16 %v103, %v102
  %v128 = vpack.c.b16 %v105, %v104
  %v129 = vpack.c.b16 %v107, %v106
  %v130 = vpack.c.b16 %v109, %v108
  %v131 = vpack.c.b16 %v111, %v110
  %v132 = vpack.c.b16 %v113, %v112
  %v133 = vpack.c.b16 %v115, %v114
  %v134 = vpack.c.b16 %v117, %v116
  %v135 = vpack.c.b16 %v119, %v118
  %152 = vmatprep.subr.bf16.mxu0 0
  %153 = vmatpush1.bf16.msra.mxu0 %v120
  %154 = vmatprep.subr.bf16.mxu0 0
  %155 = vmatpush1.bf16.msra.mxu0 %v121
  %156 = vmatprep.subr.bf16.mxu0 0
  %157 = vmatpush1.bf16.msra.mxu0 %v122
  %158 = vmatprep.subr.bf16.mxu0 0
  %159 = vmatpush1.bf16.msra.mxu0 %v123
  %160 = vmatprep.subr.bf16.mxu0 0
  %161 = vmatpush1.bf16.msra.mxu0 %v124
  %162 = vmatprep.subr.bf16.mxu0 0
  %163 = vmatpush1.bf16.msra.mxu0 %v125
  %164 = vmatprep.subr.bf16.mxu0 0
  %165 = vmatpush1.bf16.msra.mxu0 %v126
  %166 = vmatprep.subr.bf16.mxu0 0
  %167 = vmatpush1.bf16.msra.mxu0 %v127
  %168 = vmatprep.subr.bf16.mxu0 0
  %169 = vmatpush1.bf16.msra.mxu0 %v128
  %170 = vmatprep.subr.bf16.mxu0 0
  %171 = vmatpush1.bf16.msra.mxu0 %v129
  %172 = vmatprep.subr.bf16.mxu0 0
  %173 = vmatpush1.bf16.msra.mxu0 %v130
  %174 = vmatprep.subr.bf16.mxu0 0
  %175 = vmatpush1.bf16.msra.mxu0 %v131
  %176 = vmatprep.subr.bf16.mxu0 0
  %177 = vmatpush1.bf16.msra.mxu0 %v132
  %178 = vmatprep.subr.bf16.mxu0 0
  %179 = vmatpush1.bf16.msra.mxu0 %v133
  %180 = vmatprep.subr.bf16.mxu0 0
  %181 = vmatpush1.bf16.msra.mxu0 %v134
  %182 = vmatprep.subr.bf16.mxu0 0
  %183 = vmatpush1.bf16.msra.mxu0 %v135
  %184 = vmatprep.mubr.bf16.mxu0 %v53
  %185 = vmatmul.mubr.bf16.gmra.mrb[0].mxu0 %v52
  %v186 = vpop.f32.mrb[0].mxu0
  %v187 = vadd.f32 0.0, %v186
  %v188 = vpop.f32.mrb[0].mxu0
  %v189 = vpop.f32.mrb[0].mxu0
  %v190 = vadd.f32 0.0, %v189
  %v191 = vpop.f32.mrb[0].mxu0
  %192 = vdwg.mxu0
  %193 = vst [vmem:[%s2] sm:$0xff] %v187
  %194 = vst [vmem:[%s2 + $0x8] sm:$0xff] %v190
  // Predicated region
  $region10: #{fwd.5} parent=0 // pred_check
    _
  $region11: #{fwd.5} parent=0 // pred_check_branch
    %196 = sbr.rel (0) target = $region13
  $region12: #{fwd.5} parent=0 // pred_region
    _
  $region13: #{fwd.5} parent=0 // pred_fallthru
    _
  // Predicated region
  $region14: #{fwd.5} parent=0 // pred_check
    _
  $region15: #{fwd.5} parent=0 // pred_check_branch
    %198 = sbr.rel (0) target = $region17
  $region16: #{fwd.5} parent=0 // pred_region
    _
  $region17: #{fwd.5} parent=0 // pred_fallthru
    _

</llo_original>
